<compile_context>
chip_gen: v6e
topology: v6e:2x2x1
jax: 0.10.0
libtpu: 0.0.40
codegen_flags: <defaults>
</compile_context>

<pallas_src>
import jax
import jax.numpy as jnp
from jax.experimental import pallas as pl
from jax.experimental.pallas import tpu as pltpu

K = 5                      # kernel_size from the module
PAD = (K - 1) // 2         # 'same' padding
EPS = 1e-5                 # nn.GroupNorm default eps


def _gelu(x):
    # PyTorch nn.GELU() default = exact erf-based GELU.
    return 0.5 * x * (1.0 + jax.lax.erf(x * 0.7071067811865475))


def double_conv_kernel(x_ref, w1_ref, w2_ref, g_ref, b_ref, o_ref,
                       xcol_ref, hpad_ref, hcol_ref):
    # x_ref   : (1, Cin, L)        un-padded input sample (f32)
    # w1_ref  : (mid,  K*Cin)      conv1 weights, taps folded, contraction lane-dense (bf16)
    # w2_ref  : (out_c, K*mid)     conv2 weights, taps folded (bf16)
    # g_ref   : (mid, 1)           GroupNorm gamma (f32)
    # b_ref   : (mid, 1)           GroupNorm beta  (f32)
    # o_ref   : (1, out_c, L)
    # xcol_ref: (K*Cin, L)   VMEM  shifted-input stack; row k*Cin + c, col i = x[c, i+k-PAD]
    # hpad_ref: (mid, L+2*PAD) VMEM zero-halo padded intermediate activation
    # hcol_ref: (K*mid, L)   VMEM  shifted stack for conv2; row k*mid + m
    L = o_ref.shape[-1]
    Cin = x_ref.shape[1]
    mid = hpad_ref.shape[0]

    # ---- build the conv1 im2col stack straight from the input block.  No wrapper-side
    #      padding and no full zero-fill: only the <=PAD boundary sliver per tap is zeroed.
    for k in range(K):
        d = k - PAD
        r0 = k * Cin
        if d == 0:
            xcol_ref[r0:r0 + Cin, :] = x_ref[0, :, :]
        elif d > 0:
            xcol_ref[r0:r0 + Cin, :L - d] = x_ref[0, :, d:]
            xcol_ref[r0:r0 + Cin, L - d:] = jnp.zeros((Cin, d), jnp.float32)
        else:  # d < 0
            xcol_ref[r0:r0 + Cin, :-d] = jnp.zeros((Cin, -d), jnp.float32)
            xcol_ref[r0:r0 + Cin, -d:] = x_ref[0, :, :L + d]

    # ---- conv1 (no bias): single bf16 MXU matmul over the folded (K*Cin) contraction ----
    h = jnp.dot(w1_ref[...], xcol_ref[...].astype(jnp.bfloat16),
                preferred_element_type=jnp.float32)            # (mid, L) f32

    # ---- GroupNorm(1, mid): one-pass stats over the whole (mid, L) sample, f32 ----
    inv_n = 1.0 / float(mid * L)
    s1 = jnp.sum(h)
    s2 = jnp.sum(h * h)
    mean = s1 * inv_n
    var = jnp.maximum(s2 * inv_n - mean * mean, 0.0)           # biased var (PyTorch GN)
    hn = (h - mean) * jax.lax.rsqrt(var + EPS)
    hn = hn * g_ref[...] + b_ref[...]                          # per-channel affine

    # ---- GELU (exact erf form, f32) ----
    hg = _gelu(hn)

    # ---- conv2: padded slab (halo-only zeroing) -> shifted stack -> single bf16 matmul ----
    hpad_ref[:, :PAD] = jnp.zeros((mid, PAD), jnp.float32)
    hpad_ref[:, PAD + L:] = jnp.zeros((mid, PAD), jnp.float32)
    hpad_ref[:, PAD:PAD + L] = hg
    for k in range(K):
        hcol_ref[k * mid:(k + 1) * mid, :] = hpad_ref[:, k:k + L]

    y = jnp.dot(w2_ref[...], hcol_ref[...].astype(jnp.bfloat16),
                preferred_element_type=jnp.float32)            # (out_c, L) f32

    # ---- final GELU (residual=False path) ----
    o_ref[0] = _gelu(y).astype(o_ref.dtype)
    # TODO(synk): residual=True path (gelu(x + out)) needs matching in/out channels; not exercised.


def double_conv(x, w1, w2, gamma, beta):
    """x: (N, Cin, L) f32; w1: (mid, Cin, K); w2: (out_c, mid, K); gamma/beta: (mid,)."""
    N, Cin, L = x.shape
    mid = w1.shape[0]
    out_c = w2.shape[0]

    # Fold the taps into the weights; contraction on the last (lane) dim so the weight
    # tiles are lane-dense and stay resident across the grid (constant index_map):
    #   w1f[m, k*Cin + c] = w1[m, c, k]  -- matches the in-kernel im2col row ordering.
    w1f = jnp.transpose(w1, (0, 2, 1)).reshape(mid, K * Cin).astype(jnp.bfloat16)
    w2f = jnp.transpose(w2, (0, 2, 1)).reshape(out_c, K * mid).astype(jnp.bfloat16)
    g2 = gamma.reshape(mid, 1).astype(jnp.float32)
    b2 = beta.reshape(mid, 1).astype(jnp.float32)

    return pl.pallas_call(
        double_conv_kernel,
        out_shape=jax.ShapeDtypeStruct((N, out_c, L), x.dtype),
        grid_spec=pltpu.PrefetchScalarGridSpec(
            num_scalar_prefetch=0,
            grid=(N,),
            in_specs=[
                pl.BlockSpec((1, Cin, L), lambda n: (n, 0, 0)),   # un-padded input sample
                pl.BlockSpec((mid, K * Cin), lambda n: (0, 0)),   # weights resident across grid
                pl.BlockSpec((out_c, K * mid), lambda n: (0, 0)),
                pl.BlockSpec((mid, 1), lambda n: (0, 0)),
                pl.BlockSpec((mid, 1), lambda n: (0, 0)),
            ],
            out_specs=pl.BlockSpec((1, out_c, L), lambda n: (n, 0, 0)),
            scratch_shapes=[
                pltpu.VMEM((K * Cin, L), jnp.float32),            # conv1 shifted stack
                pltpu.VMEM((mid, L + 2 * PAD), jnp.float32),      # padded intermediate
                pltpu.VMEM((K * mid, L), jnp.float32),            # conv2 shifted stack
            ],
        ),
        compiler_params=pltpu.CompilerParams(
            # Samples are independent -> megacore (v7x: 2 TCs) can shard the batch axis.
            dimension_semantics=("parallel",),
            # Explicit VMEM budget, sized well under v7x's 64 MiB physical VMEM.
            vmem_limit_bytes=32 * 1024 * 1024,
        ),
    )(x, w1f, w2f, g2, b2)
    # TODO(synk): for large L, tile L into 128-multiple blocks with a (K-1) halo and a
    # two-phase GroupNorm (accumulate sum/sumsq per sample, then normalize) so a whole
    # sample need not be VMEM-resident on v7x (64 MiB VMEM).


def ref_double_conv(x, w1, w2, gamma, beta):
    # Pure-JAX f32 reference matching the PyTorch forward (residual=False).
    dn = ("NCH", "OIH", "NCH")
    h = jax.lax.conv_general_dilated(x, w1, (1,), [(PAD, PAD)], dimension_numbers=dn)
    mean = jnp.mean(h, axis=(1, 2), keepdims=True)
    var = jnp.var(h, axis=(1, 2), keepdims=True)
    hn = (h - mean) / jnp.sqrt(var + EPS)
    hn = hn * gamma[None, :, None] + beta[None, :, None]
    hg = _gelu(hn)
    y = jax.lax.conv_general_dilated(hg, w2, (1,), [(PAD, PAD)], dimension_numbers=dn)
    return _gelu(y)


if __name__ == "__main__":
    # Small shapes consistent with the module; L is a multiple of 128 so the kernel's
    # output / intermediate lane dim is dense (unmasked vst).
    N, Cin, mid, out_c, L = 2, 4, 8, 8, 128

    key = jax.random.PRNGKey(0)
    kx, kw1, kw2, kg, kb = jax.random.split(key, 5)

    x = jax.random.normal(kx, (N, Cin, L), dtype=jnp.float32)
    w1 = jax.random.normal(kw1, (mid, Cin, K), dtype=jnp.float32) * 0.2     # conv1.weight
    w2 = jax.random.normal(kw2, (out_c, mid, K), dtype=jnp.float32) * 0.2   # conv2.weight
    gamma = 1.0 + 0.1 * jax.random.normal(kg, (mid,), dtype=jnp.float32)    # GroupNorm weight
    beta = 0.1 * jax.random.normal(kb, (mid,), dtype=jnp.float32)           # GroupNorm bias

    out = jax.block_until_ready(double_conv(x, w1, w2, gamma, beta))
    ref = ref_double_conv(x, w1, w2, gamma, beta)

    assert out.shape == (N, out_c, L)
    # Kernel uses bf16 MXU operands (f32 accumulation); compare against the f32 spec
    # with a correspondingly relaxed tolerance.
    assert jnp.allclose(out, ref, atol=3e-2, rtol=3e-2), "mismatch vs reference"

    print("KERNEL_OK")
</pallas_src>

<mosaic_0001>
module attributes {stable_mosaic.version = 11 : i64} {
  func.func @double_conv_kernel(%arg0: i32, %arg1: memref<1x4x128xf32, #tpu.memory_space<vmem>>, %arg2: memref<8x20xbf16, #tpu.memory_space<vmem>>, %arg3: memref<8x40xbf16, #tpu.memory_space<vmem>>, %arg4: memref<8x1xf32, #tpu.memory_space<vmem>>, %arg5: memref<8x1xf32, #tpu.memory_space<vmem>>, %arg6: memref<1x8x128xf32, #tpu.memory_space<vmem>>, %arg7: memref<20x128xf32, #tpu.memory_space<vmem>>, %arg8: memref<8x132xf32, #tpu.memory_space<vmem>>, %arg9: memref<40x128xf32, #tpu.memory_space<vmem>>) attributes {dimension_semantics = [#tpu.dimension_semantics<parallel>], iteration_bounds = array<i64: 2>, scalar_prefetch = 0 : i64, scratch_operands = 3 : i64, tpu.core_type = #tpu.core_type<tc>, window_params = [{transform_indices = @transform_0, window_bounds = array<i64: 1, 4, 128>}, {pipeline_mode = #tpu.pipeline_mode<synchronous>, transform_indices = @transform_1, window_bounds = array<i64: 8, 20>}, {pipeline_mode = #tpu.pipeline_mode<synchronous>, transform_indices = @transform_2, window_bounds = array<i64: 8, 40>}, {pipeline_mode = #tpu.pipeline_mode<synchronous>, transform_indices = @transform_3, window_bounds = array<i64: 8, 1>}, {pipeline_mode = #tpu.pipeline_mode<synchronous>, transform_indices = @transform_4, window_bounds = array<i64: 8, 1>}, {transform_indices = @transform_5, window_bounds = array<i64: 1, 8, 128>}]} {
    %cst = arith.constant 0.000000e+00 : f32
    %0 = vector.broadcast %cst : f32 to vector<4x2xf32>
    %c0 = arith.constant 0 : index
    %c0_0 = arith.constant 0 : index
    %1 = vector.load %arg7[%c0, %c0_0] : memref<20x128xf32, #tpu.memory_space<vmem>>, vector<4x2xf32>
    tpu.vector_store %arg7[%c0, %c0_0], %0 {strides = array<i32>} : memref<20x128xf32, #tpu.memory_space<vmem>>, vector<4x2xf32>,
    %c0_1 = arith.constant 0 : index
    %c0_2 = arith.constant 0 : index
    %c0_3 = arith.constant 0 : index
    %2 = vector.load %arg1[%c0_1, %c0_2, %c0_3] : memref<1x4x128xf32, #tpu.memory_space<vmem>>, vector<1x4x126xf32>
    %3 = vector.shape_cast %2 : vector<1x4x126xf32> to vector<4x126xf32>
    %c0_4 = arith.constant 0 : index
    %c2 = arith.constant 2 : index
    %4 = vector.load %arg7[%c0_4, %c2] : memref<20x128xf32, #tpu.memory_space<vmem>>, vector<4x126xf32>
    tpu.vector_store %arg7[%c0_4, %c2], %3 {strides = array<i32>} : memref<20x128xf32, #tpu.memory_space<vmem>>, vector<4x126xf32>,
    %cst_5 = arith.constant 0.000000e+00 : f32
    %5 = vector.broadcast %cst_5 : f32 to vector<4x1xf32>
    %c4 = arith.constant 4 : index
    %c0_6 = arith.constant 0 : index
    %6 = vector.load %arg7[%c4, %c0_6] : memref<20x128xf32, #tpu.memory_space<vmem>>, vector<4x1xf32>
    tpu.vector_store %arg7[%c4, %c0_6], %5 {strides = array<i32>} : memref<20x128xf32, #tpu.memory_space<vmem>>, vector<4x1xf32>,
    %c0_7 = arith.constant 0 : index
    %c0_8 = arith.constant 0 : index
    %c0_9 = arith.constant 0 : index
    %7 = vector.load %arg1[%c0_7, %c0_8, %c0_9] : memref<1x4x128xf32, #tpu.memory_space<vmem>>, vector<1x4x127xf32>
    %8 = vector.shape_cast %7 : vector<1x4x127xf32> to vector<4x127xf32>
    %c4_10 = arith.constant 4 : index
    %c1 = arith.constant 1 : index
    %9 = vector.load %arg7[%c4_10, %c1] : memref<20x128xf32, #tpu.memory_space<vmem>>, vector<4x127xf32>
    tpu.vector_store %arg7[%c4_10, %c1], %8 {strides = array<i32>} : memref<20x128xf32, #tpu.memory_space<vmem>>, vector<4x127xf32>,
    %c0_11 = arith.constant 0 : index
    %c0_12 = arith.constant 0 : index
    %c0_13 = arith.constant 0 : index
    %10 = vector.load %arg1[%c0_11, %c0_12, %c0_13] : memref<1x4x128xf32, #tpu.memory_space<vmem>>, vector<1x4x128xf32>
    %11 = vector.shape_cast %10 : vector<1x4x128xf32> to vector<4x128xf32>
    %c8 = arith.constant 8 : index
    %c0_14 = arith.constant 0 : index
    %12 = vector.load %arg7[%c8, %c0_14] : memref<20x128xf32, #tpu.memory_space<vmem>>, vector<4x128xf32>
    tpu.vector_store %arg7[%c8, %c0_14], %11 {strides = array<i32>} : memref<20x128xf32, #tpu.memory_space<vmem>>, vector<4x128xf32>,
    %c0_15 = arith.constant 0 : index
    %c0_16 = arith.constant 0 : index
    %c1_17 = arith.constant 1 : index
    %13 = vector.load %arg1[%c0_15, %c0_16, %c1_17] : memref<1x4x128xf32, #tpu.memory_space<vmem>>, vector<1x4x127xf32>
    %14 = vector.shape_cast %13 : vector<1x4x127xf32> to vector<4x127xf32>
    %c12 = arith.constant 12 : index
    %c0_18 = arith.constant 0 : index
    %15 = vector.load %arg7[%c12, %c0_18] : memref<20x128xf32, #tpu.memory_space<vmem>>, vector<4x127xf32>
    tpu.vector_store %arg7[%c12, %c0_18], %14 {strides = array<i32>} : memref<20x128xf32, #tpu.memory_space<vmem>>, vector<4x127xf32>,
    %cst_19 = arith.constant 0.000000e+00 : f32
    %16 = vector.broadcast %cst_19 : f32 to vector<4x1xf32>
    %c12_20 = arith.constant 12 : index
    %c127 = arith.constant 127 : index
    %17 = vector.load %arg7[%c12_20, %c127] : memref<20x128xf32, #tpu.memory_space<vmem>>, vector<4x1xf32>
    tpu.vector_store %arg7[%c12_20, %c127], %16 {strides = array<i32>} : memref<20x128xf32, #tpu.memory_space<vmem>>, vector<4x1xf32>,
    %c0_21 = arith.constant 0 : index
    %c0_22 = arith.constant 0 : index
    %c2_23 = arith.constant 2 : index
    %18 = vector.load %arg1[%c0_21, %c0_22, %c2_23] : memref<1x4x128xf32, #tpu.memory_space<vmem>>, vector<1x4x126xf32>
    %19 = vector.shape_cast %18 : vector<1x4x126xf32> to vector<4x126xf32>
    %c16 = arith.constant 16 : index
    %c0_24 = arith.constant 0 : index
    %20 = vector.load %arg7[%c16, %c0_24] : memref<20x128xf32, #tpu.memory_space<vmem>>, vector<4x126xf32>
    tpu.vector_store %arg7[%c16, %c0_24], %19 {strides = array<i32>} : memref<20x128xf32, #tpu.memory_space<vmem>>, vector<4x126xf32>,
    %cst_25 = arith.constant 0.000000e+00 : f32
    %21 = vector.broadcast %cst_25 : f32 to vector<4x2xf32>
    %c16_26 = arith.constant 16 : index
    %c126 = arith.constant 126 : index
    %22 = vector.load %arg7[%c16_26, %c126] : memref<20x128xf32, #tpu.memory_space<vmem>>, vector<4x2xf32>
    tpu.vector_store %arg7[%c16_26, %c126], %21 {strides = array<i32>} : memref<20x128xf32, #tpu.memory_space<vmem>>, vector<4x2xf32>,
    %c0_27 = arith.constant 0 : index
    %c0_28 = arith.constant 0 : index
    %23 = vector.load %arg2[%c0_27, %c0_28] : memref<8x20xbf16, #tpu.memory_space<vmem>>, vector<8x20xbf16>
    %c0_29 = arith.constant 0 : index
    %c0_30 = arith.constant 0 : index
    %24 = vector.load %arg7[%c0_29, %c0_30] : memref<20x128xf32, #tpu.memory_space<vmem>>, vector<20x128xf32>
    %25 = arith.truncf %24 : vector<20x128xf32> to vector<20x128xbf16>
    %cst_31 = arith.constant dense<0.000000e+00> : vector<8x128xf32>
    %26 = tpu.matmul %23, %25, %cst_31 {dimension_numbers = #tpu.dot_dimension_numbers<[1], [0], [0], [1], [0, 0, 1, 1], [], []>} : vector<8x20xbf16>, vector<20x128xbf16>, vector<8x128xf32> -> vector<8x128xf32>
    %27 = vector.shape_cast %26 : vector<8x128xf32> to vector<1x8x128xf32>
    %cst_32 = arith.constant dense<0.000000e+00> : vector<1xf32>
    %28 = vector.multi_reduction <add>, %27, %cst_32 [1, 2] : vector<1x8x128xf32> to vector<1xf32>
    %29 = vector.shape_cast %28 : vector<1xf32> to vector<1x1x1xf32>
    %30 = vector.extract %29[0, 0, 0] : f32 from vector<1x1x1xf32>
    %31 = arith.mulf %26, %26 : vector<8x128xf32>
    %32 = vector.shape_cast %31 : vector<8x128xf32> to vector<1x8x128xf32>
    %cst_33 = arith.constant dense<0.000000e+00> : vector<1xf32>
    %33 = vector.multi_reduction <add>, %32, %cst_33 [1, 2] : vector<1x8x128xf32> to vector<1xf32>
    %34 = vector.shape_cast %33 : vector<1xf32> to vector<1x1x1xf32>
    %35 = vector.extract %34[0, 0, 0] : f32 from vector<1x1x1xf32>
    %cst_34 = arith.constant 9.765625E-4 : f32
    %36 = arith.mulf %30, %cst_34 : f32
    %cst_35 = arith.constant 9.765625E-4 : f32
    %37 = arith.mulf %35, %cst_35 : f32
    %38 = arith.mulf %36, %36 : f32
    %39 = arith.subf %37, %38 : f32
    %cst_36 = arith.constant 0.000000e+00 : f32
    %40 = arith.maximumf %39, %cst_36 : f32
    %41 = vector.broadcast %36 : f32 to vector<8x128xf32>
    %42 = arith.subf %26, %41 : vector<8x128xf32>
    %cst_37 = arith.constant 9.99999974E-6 : f32
    %43 = arith.addf %40, %cst_37 : f32
    %44 = math.rsqrt %43 : f32
    %45 = vector.broadcast %44 : f32 to vector<8x128xf32>
    %46 = arith.mulf %42, %45 : vector<8x128xf32>
    %c0_38 = arith.constant 0 : index
    %c0_39 = arith.constant 0 : index
    %47 = vector.load %arg4[%c0_38, %c0_39] : memref<8x1xf32, #tpu.memory_space<vmem>>, vector<8x1xf32>
    %48 = vector.broadcast %47 : vector<8x1xf32> to vector<8x128xf32>
    %49 = arith.mulf %46, %48 : vector<8x128xf32>
    %c0_40 = arith.constant 0 : index
    %c0_41 = arith.constant 0 : index
    %50 = vector.load %arg5[%c0_40, %c0_41] : memref<8x1xf32, #tpu.memory_space<vmem>>, vector<8x1xf32>
    %51 = vector.broadcast %50 : vector<8x1xf32> to vector<8x128xf32>
    %52 = arith.addf %49, %51 : vector<8x128xf32>
    %cst_42 = arith.constant 5.000000e-01 : f32
    %53 = vector.broadcast %cst_42 : f32 to vector<8x128xf32>
    %54 = arith.mulf %53, %52 : vector<8x128xf32>
    %cst_43 = arith.constant 0.707106769 : f32
    %55 = vector.broadcast %cst_43 : f32 to vector<8x128xf32>
    %56 = arith.mulf %52, %55 : vector<8x128xf32>
    %57 = math.erf %56 : vector<8x128xf32>
    %cst_44 = arith.constant 1.000000e+00 : f32
    %58 = vector.broadcast %cst_44 : f32 to vector<8x128xf32>
    %59 = arith.addf %58, %57 : vector<8x128xf32>
    %60 = arith.mulf %54, %59 : vector<8x128xf32>
    %cst_45 = arith.constant 0.000000e+00 : f32
    %61 = vector.broadcast %cst_45 : f32 to vector<8x2xf32>
    %c0_46 = arith.constant 0 : index
    %c0_47 = arith.constant 0 : index
    %62 = vector.load %arg8[%c0_46, %c0_47] : memref<8x132xf32, #tpu.memory_space<vmem>>, vector<8x2xf32>
    tpu.vector_store %arg8[%c0_46, %c0_47], %61 {strides = array<i32>} : memref<8x132xf32, #tpu.memory_space<vmem>>, vector<8x2xf32>,
    %cst_48 = arith.constant 0.000000e+00 : f32
    %63 = vector.broadcast %cst_48 : f32 to vector<8x2xf32>
    %c0_49 = arith.constant 0 : index
    %c130 = arith.constant 130 : index
    %64 = vector.load %arg8[%c0_49, %c130] : memref<8x132xf32, #tpu.memory_space<vmem>>, vector<8x2xf32>
    tpu.vector_store %arg8[%c0_49, %c130], %63 {strides = array<i32>} : memref<8x132xf32, #tpu.memory_space<vmem>>, vector<8x2xf32>,
    %c0_50 = arith.constant 0 : index
    %c2_51 = arith.constant 2 : index
    %65 = vector.load %arg8[%c0_50, %c2_51] : memref<8x132xf32, #tpu.memory_space<vmem>>, vector<8x128xf32>
    tpu.vector_store %arg8[%c0_50, %c2_51], %60 {strides = array<i32>} : memref<8x132xf32, #tpu.memory_space<vmem>>, vector<8x128xf32>,
    %c0_52 = arith.constant 0 : index
    %c0_53 = arith.constant 0 : index
    %66 = vector.load %arg8[%c0_52, %c0_53] : memref<8x132xf32, #tpu.memory_space<vmem>>, vector<8x128xf32>
    %c0_54 = arith.constant 0 : index
    %c0_55 = arith.constant 0 : index
    %67 = vector.load %arg9[%c0_54, %c0_55] : memref<40x128xf32, #tpu.memory_space<vmem>>, vector<8x128xf32>
    tpu.vector_store %arg9[%c0_54, %c0_55], %66 {strides = array<i32>} : memref<40x128xf32, #tpu.memory_space<vmem>>, vector<8x128xf32>,
    %c0_56 = arith.constant 0 : index
    %c1_57 = arith.constant 1 : index
    %68 = vector.load %arg8[%c0_56, %c1_57] : memref<8x132xf32, #tpu.memory_space<vmem>>, vector<8x128xf32>
    %c8_58 = arith.constant 8 : index
    %c0_59 = arith.constant 0 : index
    %69 = vector.load %arg9[%c8_58, %c0_59] : memref<40x128xf32, #tpu.memory_space<vmem>>, vector<8x128xf32>
    tpu.vector_store %arg9[%c8_58, %c0_59], %68 {strides = array<i32>} : memref<40x128xf32, #tpu.memory_space<vmem>>, vector<8x128xf32>,
    %c0_60 = arith.constant 0 : index
    %c2_61 = arith.constant 2 : index
    %70 = vector.load %arg8[%c0_60, %c2_61] : memref<8x132xf32, #tpu.memory_space<vmem>>, vector<8x128xf32>
    %c16_62 = arith.constant 16 : index
    %c0_63 = arith.constant 0 : index
    %71 = vector.load %arg9[%c16_62, %c0_63] : memref<40x128xf32, #tpu.memory_space<vmem>>, vector<8x128xf32>
    tpu.vector_store %arg9[%c16_62, %c0_63], %70 {strides = array<i32>} : memref<40x128xf32, #tpu.memory_space<vmem>>, vector<8x128xf32>,
    %c0_64 = arith.constant 0 : index
    %c3 = arith.constant 3 : index
    %72 = vector.load %arg8[%c0_64, %c3] : memref<8x132xf32, #tpu.memory_space<vmem>>, vector<8x128xf32>
    %c24 = arith.constant 24 : index
    %c0_65 = arith.constant 0 : index
    %73 = vector.load %arg9[%c24, %c0_65] : memref<40x128xf32, #tpu.memory_space<vmem>>, vector<8x128xf32>
    tpu.vector_store %arg9[%c24, %c0_65], %72 {strides = array<i32>} : memref<40x128xf32, #tpu.memory_space<vmem>>, vector<8x128xf32>,
    %c0_66 = arith.constant 0 : index
    %c4_67 = arith.constant 4 : index
    %74 = vector.load %arg8[%c0_66, %c4_67] : memref<8x132xf32, #tpu.memory_space<vmem>>, vector<8x128xf32>
    %c32 = arith.constant 32 : index
    %c0_68 = arith.constant 0 : index
    %75 = vector.load %arg9[%c32, %c0_68] : memref<40x128xf32, #tpu.memory_space<vmem>>, vector<8x128xf32>
    tpu.vector_store %arg9[%c32, %c0_68], %74 {strides = array<i32>} : memref<40x128xf32, #tpu.memory_space<vmem>>, vector<8x128xf32>,
    %c0_69 = arith.constant 0 : index
    %c0_70 = arith.constant 0 : index
    %76 = vector.load %arg3[%c0_69, %c0_70] : memref<8x40xbf16, #tpu.memory_space<vmem>>, vector<8x40xbf16>
    %c0_71 = arith.constant 0 : index
    %c0_72 = arith.constant 0 : index
    %77 = vector.load %arg9[%c0_71, %c0_72] : memref<40x128xf32, #tpu.memory_space<vmem>>, vector<40x128xf32>
    %78 = arith.truncf %77 : vector<40x128xf32> to vector<40x128xbf16>
    %cst_73 = arith.constant dense<0.000000e+00> : vector<8x128xf32>
    %79 = tpu.matmul %76, %78, %cst_73 {dimension_numbers = #tpu.dot_dimension_numbers<[1], [0], [0], [1], [0, 0, 1, 1], [], []>} : vector<8x40xbf16>, vector<40x128xbf16>, vector<8x128xf32> -> vector<8x128xf32>
    %cst_74 = arith.constant 5.000000e-01 : f32
    %80 = vector.broadcast %cst_74 : f32 to vector<8x128xf32>
    %81 = arith.mulf %80, %79 : vector<8x128xf32>
    %cst_75 = arith.constant 0.707106769 : f32
    %82 = vector.broadcast %cst_75 : f32 to vector<8x128xf32>
    %83 = arith.mulf %79, %82 : vector<8x128xf32>
    %84 = math.erf %83 : vector<8x128xf32>
    %cst_76 = arith.constant 1.000000e+00 : f32
    %85 = vector.broadcast %cst_76 : f32 to vector<8x128xf32>
    %86 = arith.addf %85, %84 : vector<8x128xf32>
    %87 = arith.mulf %81, %86 : vector<8x128xf32>
    %c0_77 = arith.constant 0 : index
    %c0_78 = arith.constant 0 : index
    %c0_79 = arith.constant 0 : index
    %88 = vector.load %arg6[%c0_77, %c0_78, %c0_79] : memref<1x8x128xf32, #tpu.memory_space<vmem>>, vector<1x8x128xf32>
    %89 = vector.shape_cast %88 : vector<1x8x128xf32> to vector<8x128xf32>
    %90 = vector.shape_cast %87 : vector<8x128xf32> to vector<1x8x128xf32>
    tpu.vector_store %arg6[%c0_77, %c0_78, %c0_79], %90 {strides = array<i32>} : memref<1x8x128xf32, #tpu.memory_space<vmem>>, vector<1x8x128xf32>,
    return
  }
  func.func @transform_0(%arg0: i32) -> (i32, i32, i32) {
    %c0_i32 = arith.constant 0 : i32
    %c0_i32_0 = arith.constant 0 : i32
    %c0_i32_1 = arith.constant 0 : i32
    return %arg0, %c0_i32, %c0_i32_0 : i32, i32, i32
  }
  func.func @transform_1(%arg0: i32) -> (i32, i32) {
    %c0_i32 = arith.constant 0 : i32
    %c0_i32_0 = arith.constant 0 : i32
    %c0_i32_1 = arith.constant 0 : i32
    return %c0_i32, %c0_i32_0 : i32, i32
  }
  func.func @transform_2(%arg0: i32) -> (i32, i32) {
    %c0_i32 = arith.constant 0 : i32
    %c0_i32_0 = arith.constant 0 : i32
    %c0_i32_1 = arith.constant 0 : i32
    return %c0_i32, %c0_i32_0 : i32, i32
  }
  func.func @transform_3(%arg0: i32) -> (i32, i32) {
    %c0_i32 = arith.constant 0 : i32
    %c0_i32_0 = arith.constant 0 : i32
    %c0_i32_1 = arith.constant 0 : i32
    return %c0_i32, %c0_i32_0 : i32, i32
  }
  func.func @transform_4(%arg0: i32) -> (i32, i32) {
    %c0_i32 = arith.constant 0 : i32
    %c0_i32_0 = arith.constant 0 : i32
    %c0_i32_1 = arith.constant 0 : i32
    return %c0_i32, %c0_i32_0 : i32, i32
  }
  func.func @transform_5(%arg0: i32) -> (i32, i32, i32) {
    %c0_i32 = arith.constant 0 : i32
    %c0_i32_0 = arith.constant 0 : i32
    %c0_i32_1 = arith.constant 0 : i32
    return %arg0, %c0_i32, %c0_i32_0 : i32, i32, i32
  }
}

</mosaic_0001>

<llo_original>
// kernel: tpu_custom_call.1
$region0: #{tpu_custom_call.1}
  #allocation0 [shape = 'u32[]', space=smem, size = 0x4, offset = 0x4, fixed_abs, tag = 'smem constant byte address 0x4 - core index']
  #allocation1 [shape = 'u32[144,128]{1,0:T(1,128)}', space=vmem, size = 0x12000, scoped, tag = 'internal scratch']
  #allocation2 [shape = 'f32[20,128]{1,0:T(8,128)}', space=vmem, size = 0x3000, scoped, tag = 'scratch operand']
  #allocation3 [shape = 'f32[8,132]{1,0:T(8,128)}', space=vmem, size = 0x2000, scoped, tag = 'scratch operand']
  #allocation4 [shape = 'f32[40,128]{1,0:T(8,128)}', space=vmem, size = 0x5000, scoped, tag = 'scratch operand']
  %s0 = inlined_call_operand.vmem [shape: f32[2,4,128], index: 0, kind: input, shape index: {}]
  %s1 = inlined_call_operand.vmem [shape: bf16[8,20], index: 1, kind: input, shape index: {}]
  %s2 = inlined_call_operand.vmem [shape: bf16[8,40], index: 2, kind: input, shape index: {}]
  %s3 = inlined_call_operand.vmem [shape: f32[8,1], index: 3, kind: input, shape index: {}]
  %s4 = inlined_call_operand.vmem [shape: f32[8,1], index: 4, kind: input, shape index: {}]
  %s5 = inlined_call_operand.hbm [shape: f32[2,8,128], index: 5, kind: output, shape index: {}]
  %s6 = sld [smem:[#allocation0]]
  $region53: #{tpu_custom_call.1} parent=0
    _
  %s8 = ssub.s32 1, %s6
  %s9 = scalar_select 0, %s8, %s6
  $region1: #{tpu_custom_call.1} parent=0
    #allocation5 [shape = 'u8[8192]{0}', space=vmem, size = 0x2000, scoped, tag = 'output window, operand 0']
    #allocation6 [shape = 's32[2]{0}', space=sflag, size = 0x8, scoped, tag = 'scoped memory for tpu_custom_call.1']
    %10 = vsyncpa [#allocation6], 0
    %s11 = scalar_lea.sflag [#allocation6], 1
    %12 = vsyncpa %s11, 0
    loop: start=0, step=1, limit=4
    $region2: #{tpu_custom_call.1} parent=1 // loop_pre_header
      _
    $region3: #{tpu_custom_call.1} parent=1 // loop_header
      %s14 = sphi 0, %s18
      %p15 = scmp.ge.s32.totalorder %s14, 4
      %s24 = sphi 0, %s26
      %s27 = sphi 0, %s24
      %s28 = sphi 0, %s27
      %s44 = sphi 0, %s28
      %s48 = sphi 0, %s48
      %s50 = sphi 0, %s48
      %s51 = sphi 0, %s50
      %s65 = sphi 0, %s51
      %s69 = sphi 0, %s69
      %s71 = sphi 0, %s69
      %s72 = sphi 0, %s71
      %s86 = sphi 0, %s72
      %s90 = sphi 0, %s90
      %s92 = sphi 0, %s90
      %s93 = sphi 0, %s92
      %s107 = sphi 0, %s93
      %s111 = sphi 0, %s111
      %s113 = sphi 0, %s111
      %s114 = sphi 0, %s113
      %s128 = sphi 0, %s114
      %s134 = sphi 0, %s136
      %s137 = sphi 0, %s134
      %s138 = sphi 0, %s137
      %s154 = sphi 0, %s138
    $region4: #{tpu_custom_call.1} parent=1 // loop_header_branch
      %17 = sbr.rel (%p15) target = $region8
    $region5: #{tpu_custom_call.1} parent=1 // loop_body
      %s19 = ssub.s32 %s14, 1
      %s20 = ssub.s32 %s14, 2
      %s21 = sadd.s32 %s14, 1
      %s22 = ssub.s32 %s14, %s21
      %p23 = scmp.eq.s32.totalorder %s22, 0
      %s25 = sadd.s32 %s24, 1
      %s26 = scalar_select %p23, %s24, %s25
      %p29 = pneg %p23
      %p30 = scmp.eq.s32.totalorder %s14, 1
      %p31 = por %p29, %p30
      %p32 = scmp.ne.s32.totalorder %s24, %s27
      %p33 = scmp.eq.s32.totalorder %s14, 0
      %p34 = por %p32, %p33
      %p35 = scmp.ne.s32.totalorder %s24, %s27
      %p36 = scmp.eq.s32.totalorder %s19, 1
      %p37 = por %p35, %p36
      %p38 = scmp.ne.s32.totalorder %s27, %s28
      %p39 = scmp.eq.s32.totalorder %s19, 0
      %p40 = por %p38, %p39
      %p41 = scmp.ne.s32.totalorder %s27, %s28
      %p42 = scmp.eq.s32.totalorder %s20, 1
      %p43 = por %p41, %p42
      %p45 = scmp.ne.s32.totalorder %s28, %s44
      %p46 = scmp.eq.s32.totalorder %s20, 0
      %p47 = por %p45, %p46
      %s49 = sadd.s32 %s48, 1
      %p52 = scmp.eq.s32.totalorder %s14, 1
      %p53 = scmp.ne.s32.totalorder %s48, %s50
      %p54 = scmp.eq.s32.totalorder %s14, 0
      %p55 = por %p53, %p54
      %p56 = scmp.ne.s32.totalorder %s48, %s50
      %p57 = scmp.eq.s32.totalorder %s19, 1
      %p58 = por %p56, %p57
      %p59 = scmp.ne.s32.totalorder %s50, %s51
      %p60 = scmp.eq.s32.totalorder %s19, 0
      %p61 = por %p59, %p60
      %p62 = scmp.ne.s32.totalorder %s50, %s51
      %p63 = scmp.eq.s32.totalorder %s20, 1
      %p64 = por %p62, %p63
      %p66 = scmp.ne.s32.totalorder %s51, %s65
      %p67 = scmp.eq.s32.totalorder %s20, 0
      %p68 = por %p66, %p67
      %s70 = sadd.s32 %s69, 1
      %p73 = scmp.eq.s32.totalorder %s14, 1
      %p74 = scmp.ne.s32.totalorder %s69, %s71
      %p75 = scmp.eq.s32.totalorder %s14, 0
      %p76 = por %p74, %p75
      %p77 = scmp.ne.s32.totalorder %s69, %s71
      %p78 = scmp.eq.s32.totalorder %s19, 1
      %p79 = por %p77, %p78
      %p80 = scmp.ne.s32.totalorder %s71, %s72
      %p81 = scmp.eq.s32.totalorder %s19, 0
      %p82 = por %p80, %p81
      %p83 = scmp.ne.s32.totalorder %s71, %s72
      %p84 = scmp.eq.s32.totalorder %s20, 1
      %p85 = por %p83, %p84
      %p87 = scmp.ne.s32.totalorder %s72, %s86
      %p88 = scmp.eq.s32.totalorder %s20, 0
      %p89 = por %p87, %p88
      %s91 = sadd.s32 %s90, 1
      %p94 = scmp.eq.s32.totalorder %s14, 1
      %p95 = scmp.ne.s32.totalorder %s90, %s92
      %p96 = scmp.eq.s32.totalorder %s14, 0
      %p97 = por %p95, %p96
      %p98 = scmp.ne.s32.totalorder %s90, %s92
      %p99 = scmp.eq.s32.totalorder %s19, 1
      %p100 = por %p98, %p99
      %p101 = scmp.ne.s32.totalorder %s92, %s93
      %p102 = scmp.eq.s32.totalorder %s19, 0
      %p103 = por %p101, %p102
      %p104 = scmp.ne.s32.totalorder %s92, %s93
      %p105 = scmp.eq.s32.totalorder %s20, 1
      %p106 = por %p104, %p105
      %p108 = scmp.ne.s32.totalorder %s93, %s107
      %p109 = scmp.eq.s32.totalorder %s20, 0
      %p110 = por %p108, %p109
      %s112 = sadd.s32 %s111, 1
      %p115 = scmp.eq.s32.totalorder %s14, 1
      %p116 = scmp.ne.s32.totalorder %s111, %s113
      %p117 = scmp.eq.s32.totalorder %s14, 0
      %p118 = por %p116, %p117
      %p119 = scmp.ne.s32.totalorder %s111, %s113
      %p120 = scmp.eq.s32.totalorder %s19, 1
      %p121 = por %p119, %p120
      %p122 = scmp.ne.s32.totalorder %s113, %s114
      %p123 = scmp.eq.s32.totalorder %s19, 0
      %p124 = por %p122, %p123
      %p125 = scmp.ne.s32.totalorder %s113, %s114
      %p126 = scmp.eq.s32.totalorder %s20, 1
      %p127 = por %p125, %p126
      %p129 = scmp.ne.s32.totalorder %s114, %s128
      %p130 = scmp.eq.s32.totalorder %s20, 0
      %p131 = por %p129, %p130
      %s132 = ssub.s32 %s14, %s21
      %p133 = scmp.eq.s32.totalorder %s132, 0
      %s135 = sadd.s32 %s134, 1
      %s136 = scalar_select %p133, %s134, %s135
      %p139 = pneg %p133
      %p140 = scmp.eq.s32.totalorder %s14, 1
      %p141 = por %p139, %p140
      %p142 = scmp.ne.s32.totalorder %s134, %s137
      %p143 = scmp.eq.s32.totalorder %s14, 0
      %p144 = por %p142, %p143
      %p145 = scmp.ne.s32.totalorder %s134, %s137
      %p146 = scmp.eq.s32.totalorder %s19, 1
      %p147 = por %p145, %p146
      %p148 = scmp.ne.s32.totalorder %s137, %s138
      %p149 = scmp.eq.s32.totalorder %s19, 0
      %p150 = por %p148, %p149
      %p151 = scmp.ne.s32.totalorder %s137, %s138
      %p152 = scmp.eq.s32.totalorder %s20, 1
      %p153 = por %p151, %p152
      %p155 = scmp.ne.s32.totalorder %s138, %s154
      %p156 = scmp.eq.s32.totalorder %s20, 0
      %p157 = por %p155, %p156
      %p158 = scmp.le.s32.totalorder 1, %s14
      %p159 = scmp.lt.s32.totalorder %s14, 3
      %p160 = pnand %p158, %p159
      %p161 = pneg %p160
      // Predicated region
      $region9: #{tpu_custom_call.1} parent=5 // pred_check
        _
      $region10: #{tpu_custom_call.1} parent=5 // pred_check_branch
        %163 = sbr.rel (%p160) target = $region12
      $region11: #{tpu_custom_call.1} parent=5 // pred_region
        %s164 = ssub.s32 %s14, 1
        // Predicated region
        $region13: #{tpu_custom_call.1} parent=11 // pred_check
          %p165 = pneg %p61
        $region14: #{tpu_custom_call.1} parent=11 // pred_check_branch
          %167 = sbr.rel (%p165) target = $region16
        $region15: #{tpu_custom_call.1} parent=11 // pred_region
          _
        $region16: #{tpu_custom_call.1} parent=11 // pred_fallthru
          _
        // Predicated region
        $region17: #{tpu_custom_call.1} parent=11 // pred_check
          %p168 = pneg %p82
        $region18: #{tpu_custom_call.1} parent=11 // pred_check_branch
          %170 = sbr.rel (%p168) target = $region20
        $region19: #{tpu_custom_call.1} parent=11 // pred_region
          _
        $region20: #{tpu_custom_call.1} parent=11 // pred_fallthru
          _
        // Predicated region
        $region21: #{tpu_custom_call.1} parent=11 // pred_check
          %p171 = pneg %p103
        $region22: #{tpu_custom_call.1} parent=11 // pred_check_branch
          %173 = sbr.rel (%p171) target = $region24
        $region23: #{tpu_custom_call.1} parent=11 // pred_region
          _
        $region24: #{tpu_custom_call.1} parent=11 // pred_fallthru
          _
        // Predicated region
        $region25: #{tpu_custom_call.1} parent=11 // pred_check
          %p174 = pneg %p124
        $region26: #{tpu_custom_call.1} parent=11 // pred_check_branch
          %176 = sbr.rel (%p174) target = $region28
        $region27: #{tpu_custom_call.1} parent=11 // pred_region
          _
        $region28: #{tpu_custom_call.1} parent=11 // pred_fallthru
          _
      $region12: #{tpu_custom_call.1} parent=5 // pred_fallthru
        _
      %p177 = scmp.lt.s32.totalorder %s14, 2
      // Predicated region
      $region29: #{tpu_custom_call.1} parent=5 // pred_check
        %p178 = pneg %p177
      $region30: #{tpu_custom_call.1} parent=5 // pred_check_branch
        %180 = sbr.rel (%p178) target = $region32
      $region31: #{tpu_custom_call.1} parent=5 // pred_region
        // Predicated region
        $region33: #{tpu_custom_call.1} parent=31 // pred_check
          %p181 = pneg %p34
        $region34: #{tpu_custom_call.1} parent=31 // pred_check_branch
          %183 = sbr.rel (%p181) target = $region36
        $region35: #{tpu_custom_call.1} parent=31 // pred_region
          %p184 = scmp.lt.s32.totalorder %s14, 1
          %s185 = scalar_select %p184, %s14, 1
          %s186 = smul.addr %s185, 4
          %s187 = scalar_lea.vmem %s0, %s186
        $region36: #{tpu_custom_call.1} parent=31 // pred_fallthru
          _
      $region32: #{tpu_custom_call.1} parent=5 // pred_fallthru
        _
      %p188 = scmp.le.s32.totalorder 1, %s14
      %p189 = scmp.lt.s32.totalorder %s14, 3
      %p190 = pnand %p188, %p189
      %p191 = pneg %p190
      // Predicated region
      $region37: #{tpu_custom_call.1} parent=5 // pred_check
        _
      $region38: #{tpu_custom_call.1} parent=5 // pred_check_branch
        %193 = sbr.rel (%p190) target = $region40
      $region39: #{tpu_custom_call.1} parent=5 // pred_region
        %s194 = ssub.s32 %s14, 1
        %p195 = scmp.lt.s32.totalorder %s19, 1
        %s196 = scalar_select %p195, %s19, 1
        %s197 = smul.addr %s196, 4
        %s198 = scalar_lea.vmem %s0, %s197
        %p199 = pneg %p40
        %p200 = pneg %p37
        %p201 = pneg %p61
        %p202 = pneg %p58
        %p203 = pneg %p82
        %p204 = pneg %p79
        %p205 = pneg %p103
        %p206 = pneg %p100
        %p207 = pneg %p124
        %p208 = pneg %p121
        %p209 = pneg %p150
        %p210 = pneg %p147
        %s211 = sand.u32 %s137, 1
        %s212 = scalar_lea.sflag [#allocation6], %s211
        %s213 = sand.u32 %s137, 1
        %s214 = smul.addr %s213, 8
        %s215 = scalar_lea.vmem [#allocation5], %s214
        %p216 = scmp.lt.s32.totalorder %s19, 1
        %s217 = scalar_select %p216, %s19, 1
        %s218 = smul.addr %s217, 4
        %s219 = scalar_lea.vmem %s0, %s218
        %vm221 = vcmask 11264
        %222 = vst.msk [vmem:[#allocation2] sm:$0xf] %vm221, 0.0
        %v223 = vld [vmem:[%s219] sm:$0xf]
        %225 = vrot.lane.b32.xlu0 %v223, 2
        %v226 = vpop.permute.xlu0 %225
        %vm228 = vcmask 1043472
        %229 = vst.msk [vmem:[#allocation2] sm:$0xf] %vm228, %v226
        %vm230 = vcmask 3072
        %231 = vst.msk [vmem:[#allocation2 + $0x4] sm:$0xf] %vm230, 0.0
        %v232 = vld [vmem:[%s219] sm:$0xf]
        %234 = vrot.lane.b32.xlu0 %v232, 1
        %v235 = vpop.permute.xlu0 %234
        %vm237 = vcmask 1043464
        %238 = vst.msk [vmem:[#allocation2 + $0x4] sm:$0xf] %vm237, %v235
        %v239 = vld [vmem:[%s219] sm:$0xf]
        %240 = vst [vmem:[#allocation2 + $0x8] sm:$0xf] %v239
        %v241 = vld [vmem:[%s219] sm:$0xf]
        %243 = vrot.lane.b32.xlu0 %v241, 127
        %v244 = vpop.permute.xlu0 %243
        %vm246 = vcmask 1035264
        %247 = vst.msk [vmem:[#allocation2 + $0xc] sm:$0xf] %vm246, %v244
        %vm248 = vcmask 1044472
        %249 = vst.msk [vmem:[#allocation2 + $0xc] sm:$0xf] %vm248, 0.0
        %v250 = vld [vmem:[%s219] sm:$0xf]
        %252 = vrot.lane.b32.xlu0 %v250, 126
        %v253 = vpop.permute.xlu0 %252
        %vm255 = vcmask 1027072
        %256 = vst.msk [vmem:[#allocation2 + $0x10] sm:$0xf] %vm255, %v253
        %vm257 = vcmask 1044464
        %258 = vst.msk [vmem:[#allocation2 + $0x10] sm:$0xf] %vm257, 0.0
        %v259 = vld [vmem:[%s1] sm:$0xf]
        %v260 = vld [vmem:[#allocation2] sm:$0xff]
        %v261 = vld [vmem:[#allocation2 + $0x8] sm:$0xff]
        %v262 = vld [vmem:[#allocation2 + $0x10] sm:$0xf]
        %v263 = vpack.c.bf16 %v261, %v260
        %v264 = vpack.c.bf16 %v262, %v262
        %vm265 = vcmask 162816
        %v267 = vsel %vm265, %v259, 0
        %vm269 = vcmask 1041408
        %v271 = vsel %vm269, %v264, 0
        %273 = vmatprep.subr.bf16.mxu0 0
        %274 = vmatpush1.bf16.msra.mxu0 0
        %275 = vmatprep.subr.bf16.mxu0 0
        %276 = vmatpush1.bf16.msra.mxu0 0
        %277 = vmatprep.subr.bf16.mxu0 0
        %278 = vmatpush1.bf16.msra.mxu0 0
        %279 = vmatprep.subr.bf16.mxu0 0
        %280 = vmatpush1.bf16.msra.mxu0 0
        %281 = vmatprep.subr.bf16.mxu0 0
        %282 = vmatpush1.bf16.msra.mxu0 0
        %283 = vmatprep.subr.bf16.mxu0 0
        %284 = vmatpush1.bf16.msra.mxu0 0
        %285 = vmatprep.subr.bf16.mxu0 0
        %286 = vmatpush1.bf16.msra.mxu0 %v271
        %287 = vmatprep.subr.bf16.mxu0 0
        %288 = vmatpush1.bf16.msra.mxu0 %v263
        %289 = vmatprep.subr.bf16.mxu0 0
        %290 = vmatpush2.bf16.msra.mxu0 0
        %291 = vmatprep.subr.bf16.mxu0 0
        %292 = vmatpush2.bf16.msra.mxu0 0
        %293 = vmatprep.subr.bf16.mxu0 0
        %294 = vmatpush2.bf16.msra.mxu0 0
        %295 = vmatprep.subr.bf16.mxu0 0
        %296 = vmatpush2.bf16.msra.mxu0 0
        %297 = vmatprep.subr.bf16.mxu0 0
        %298 = vmatpush2.bf16.msra.mxu0 0
        %299 = vmatprep.subr.bf16.mxu0 0
        %300 = vmatpush2.bf16.msra.mxu0 0
        %301 = vmatprep.subr.bf16.mxu0 0
        %302 = vmatpush2.bf16.msra.mxu0 0
        %303 = vmatprep.subr.bf16.mxu0 0
        %304 = vmatpush2.bf16.msra.mxu0 0
        %305 = vmatprep.mubr.bf16.mxu0 0
        %306 = vmatmul.mubr.bf16.gmra.mxu0 %v267
        %v307 = vpop.f32.mrf.mxu0
        %v308 = vadd.f32 0.0, %v307
        %v309 = vpop.f32.mrf.mxu0
        %v310 = vpop.f32.mrf.mxu0
        %v311 = vpop.f32.mrf.mxu0
        %312 = vdwg.mxu0
        %313 = vadd.xlane.f32.xlu0 %v308
        %v314 = vpop.xlane.xlu0 %313
        %v315 = vrot.slane %v314, 4
        %v316 = vadd.f32 %v314, %v315
        %v317 = vrot.slane %v316, 2
        %v318 = vadd.f32 %v316, %v317
        %v319 = vrot.slane %v318, 1
        %v320 = vadd.f32 %v318, %v319
        %s321 = vtos %v320
        %v322 = vmul.f32 %v308, %v308
        %323 = vadd.xlane.f32.xlu0 %v322
        %v324 = vpop.xlane.xlu0 %323
        %v325 = vrot.slane %v324, 4
        %v326 = vadd.f32 %v324, %v325
        %v327 = vrot.slane %v326, 2
        %v328 = vadd.f32 %v326, %v327
        %v329 = vrot.slane %v328, 1
        %v330 = vadd.f32 %v328, %v329
        %s331 = vtos %v330
        %s332 = smul.f32 %s321, 0.0009765625
        %s333 = smul.f32 %s331, 0.0009765625
        %s334 = smul.f32 %s332, %s332
        %s335 = ssub.f32 %s333, %s334
        %s336 = smax.f32 %s335, 0.0
        %v337 = vstv %s332
        %v338 = vsub.f32 %v308, %v337
        %s339 = sadd.f32 %s336, 1e-05
        %v340 = vstv %s339
        %v341 = vrsqrt.pop %v340
        %s342 = vtos %v341
        %v343 = vstv %s342
        %v344 = vmul.f32 %v338, %v343
        %v345 = vld [vmem:[%s3] sm:$0xff]
        %347 = vset.pattern.permute.xlu0 0
        %348 = vperm.xlu0 %347, %v345
        %v349 = vpop.permute.xlu0 %348
        %v351 = vmul.f32 %v344, %v349
        %v352 = vld [vmem:[%s4] sm:$0xff]
        %354 = vset.pattern.permute.xlu0 0
        %355 = vperm.xlu0 %354, %v352
        %v356 = vpop.permute.xlu0 %355
        %v358 = vadd.f32 %v351, %v356
        %v359 = vmul.f32 %v358, 0.5
        %v360 = vmul.f32 %v358, 0.70710677
        %v361 = verf.f32.pop %v360
        %v362 = vadd.f32 %v361, 1.0
        %v363 = vmul.f32 %v359, %v362
        %vm364 = vcmask 15360
        %365 = vst.msk [vmem:[#allocation3] sm:$0xff] %vm364, 0.0
        %vm366 = vcmask 31760
        %367 = vst.msk [vmem:[#allocation3 + $0x8] sm:$0xff] %vm366, 0.0
        %369 = vrot.lane.b32.xlu0 %v363, 2
        %v370 = vpop.permute.xlu0 %369
        %vm372 = vcmask 1047568
        %373 = vst.msk [vmem:[#allocation3] sm:$0xff] %vm372, %v370
        %374 = vst.msk [vmem:[#allocation3 + $0x8] sm:$0xff] %vm364, %v370
        %v375 = vld [vmem:[#allocation3] sm:$0xff]
        %376 = vst [vmem:[#allocation4] sm:$0xff] %v375
        %v377 = vld [vmem:[#allocation3] sm:$0xff]
        %v378 = vld [vmem:[#allocation3 + $0x8] sm:$0xff]
        %381 = vrot.lane.b32.xlu0 %v377, 127
        %v382 = vpop.permute.xlu0 %381
        %383 = vrot.lane.b32.xlu0 %v378, 127
        %v384 = vpop.permute.xlu0 %383
        %vm385 = vcmask 1039360
        %v386 = vsel %vm385, %v382, %v384
        %388 = vst [vmem:[#allocation4 + $0x8] sm:$0xff] %v386
        %v389 = vld [vmem:[#allocation3] sm:$0xff]
        %v390 = vld [vmem:[#allocation3 + $0x8] sm:$0xff]
        %393 = vrot.lane.b32.xlu0 %v389, 126
        %v394 = vpop.permute.xlu0 %393
        %395 = vrot.lane.b32.xlu0 %v390, 126
        %v396 = vpop.permute.xlu0 %395
        %vm397 = vcmask 1031168
        %v398 = vsel %vm397, %v394, %v396
        %400 = vst [vmem:[#allocation4 + $0x10] sm:$0xff] %v398
        %v401 = vld [vmem:[#allocation3] sm:$0xff]
        %v402 = vld [vmem:[#allocation3 + $0x8] sm:$0xff]
        %405 = vrot.lane.b32.xlu0 %v401, 125
        %v406 = vpop.permute.xlu0 %405
        %407 = vrot.lane.b32.xlu0 %v402, 125
        %v408 = vpop.permute.xlu0 %407
        %vm409 = vcmask 1022976
        %v410 = vsel %vm409, %v406, %v408
        %412 = vst [vmem:[#allocation4 + $0x18] sm:$0xff] %v410
        %v413 = vld [vmem:[#allocation3] sm:$0xff]
        %v414 = vld [vmem:[#allocation3 + $0x8] sm:$0xff]
        %417 = vrot.lane.b32.xlu0 %v413, 124
        %v418 = vpop.permute.xlu0 %417
        %419 = vrot.lane.b32.xlu0 %v414, 124
        %v420 = vpop.permute.xlu0 %419
        %vm421 = vcmask 1014784
        %v422 = vsel %vm421, %v418, %v420
        %424 = vst [vmem:[#allocation4 + $0x20] sm:$0xff] %v422
        %v425 = vld [vmem:[%s2] sm:$0xf]
        %v426 = vld [vmem:[#allocation4] sm:$0xff]
        %v427 = vld [vmem:[#allocation4 + $0x8] sm:$0xff]
        %v428 = vld [vmem:[#allocation4 + $0x10] sm:$0xff]
        %v429 = vld [vmem:[#allocation4 + $0x18] sm:$0xff]
        %v430 = vld [vmem:[#allocation4 + $0x20] sm:$0xff]
        %v431 = vpack.c.bf16 %v427, %v426
        %v432 = vpack.c.bf16 %v429, %v428
        %v433 = vpack.c.bf16 %v430, %v430
        %vm434 = vcmask 326656
        %v436 = vsel %vm434, %v425, 0
        %vm438 = vcmask 1043456
        %v440 = vsel %vm438, %v433, 0
        %442 = vmatprep.subr.bf16.mxu0 0
        %443 = vmatpush1.bf16.msra.mxu0 0
        %444 = vmatprep.subr.bf16.mxu0 0
        %445 = vmatpush1.bf16.msra.mxu0 0
        %446 = vmatprep.subr.bf16.mxu0 0
        %447 = vmatpush1.bf16.msra.mxu0 0
        %448 = vmatprep.subr.bf16.mxu0 0
        %449 = vmatpush1.bf16.msra.mxu0 0
        %450 = vmatprep.subr.bf16.mxu0 0
        %451 = vmatpush1.bf16.msra.mxu0 0
        %452 = vmatprep.subr.bf16.mxu0 0
        %453 = vmatpush1.bf16.msra.mxu0 %v440
        %454 = vmatprep.subr.bf16.mxu0 0
        %455 = vmatpush1.bf16.msra.mxu0 %v432
        %456 = vmatprep.subr.bf16.mxu0 0
        %457 = vmatpush1.bf16.msra.mxu0 %v431
        %458 = vmatprep.subr.bf16.mxu0 0
        %459 = vmatpush2.bf16.msra.mxu0 0
        %460 = vmatprep.subr.bf16.mxu0 0
        %461 = vmatpush2.bf16.msra.mxu0 0
        %462 = vmatprep.subr.bf16.mxu0 0
        %463 = vmatpush2.bf16.msra.mxu0 0
        %464 = vmatprep.subr.bf16.mxu0 0
        %465 = vmatpush2.bf16.msra.mxu0 0
        %466 = vmatprep.subr.bf16.mxu0 0
        %467 = vmatpush2.bf16.msra.mxu0 0
        %468 = vmatprep.subr.bf16.mxu0 0
        %469 = vmatpush2.bf16.msra.mxu0 0
        %470 = vmatprep.subr.bf16.mxu0 0
        %471 = vmatpush2.bf16.msra.mxu0 0
        %472 = vmatprep.subr.bf16.mxu0 0
        %473 = vmatpush2.bf16.msra.mxu0 0
        %474 = vmatprep.mubr.bf16.mxu0 0
        %475 = vmatmul.mubr.bf16.gmra.mxu0 %v436
        %v476 = vpop.f32.mrf.mxu0
        %v477 = vadd.f32 0.0, %v476
        %v478 = vpop.f32.mrf.mxu0
        %v479 = vpop.f32.mrf.mxu0
        %v480 = vpop.f32.mrf.mxu0
        %481 = vdwg.mxu0
        %v482 = vmul.f32 %v477, 0.5
        %v483 = vmul.f32 %v477, 0.70710677
        %v484 = verf.f32.pop %v483
        %v485 = vadd.f32 %v484, 1.0
        %v486 = vmul.f32 %v482, %v485
        %487 = vst [vmem:[%s215] sm:$0xff] %v486
        %s488 = sand.u32 %s137, 1
        %s489 = scalar_lea.sflag [#allocation6], %s488
        %s490 = sand.u32 %s137, 1
        %s491 = smul.addr %s490, 8
        %s492 = scalar_lea.vmem [#allocation5], %s491
        // Predicated region
        $region41: #{tpu_custom_call.1} parent=39 // pred_check
          %p493 = pneg %p147
        $region42: #{tpu_custom_call.1} parent=39 // pred_check_branch
          %495 = sbr.rel (%p493) target = $region44
        $region43: #{tpu_custom_call.1} parent=39 // pred_region
          %s497 = ssub.s32 128, 128
          %498 = vsyncadd %s489, %s497
          %s499 = smul.addr %s19, 128
          %s500 = scalar_lea.hbm %s5, %s499
          %s502 = sshll.u32 %s492, 4
          %s503 = int_to_ptr.vmem [resolvable:$true] %s502
          %505 = dma.vmem_to_hbm [thread:$0]  %s503, 128, %s500, %s489
        $region44: #{tpu_custom_call.1} parent=39 // pred_fallthru
          _
      $region40: #{tpu_custom_call.1} parent=5 // pred_fallthru
        _
      %p506 = scmp.le.s32.totalorder 2, %s14
      // Predicated region
      $region45: #{tpu_custom_call.1} parent=5 // pred_check
        %p507 = pneg %p506
      $region46: #{tpu_custom_call.1} parent=5 // pred_check_branch
        %509 = sbr.rel (%p507) target = $region48
      $region47: #{tpu_custom_call.1} parent=5 // pred_region
        %s510 = ssub.s32 %s14, 2
        // Predicated region
        $region49: #{tpu_custom_call.1} parent=47 // pred_check
          %p511 = pneg %p153
        $region50: #{tpu_custom_call.1} parent=47 // pred_check_branch
          %513 = sbr.rel (%p511) target = $region52
        $region51: #{tpu_custom_call.1} parent=47 // pred_region
          %s514 = sand.u32 %s138, 1
          %s515 = scalar_lea.sflag [#allocation6], %s514
          %s516 = sand.u32 %s138, 1
          %s517 = smul.addr %s516, 8
          %s518 = scalar_lea.vmem [#allocation5], %s517
          %519 = dma.done %s515, 128
        $region52: #{tpu_custom_call.1} parent=47 // pred_fallthru
          _
      $region48: #{tpu_custom_call.1} parent=5 // pred_fallthru
        _
    $region6: #{tpu_custom_call.1} parent=1 // loop_footer
      %s18 = sadd.s32 1, %s14
    $region7: #{tpu_custom_call.1} parent=1 // loop_footer_branch
      %13 = sbr.rel target = $region3
    $region8: #{tpu_custom_call.1} parent=1 // loop_exit
      _
    %520 = vsyncpa [#allocation6], 1
    %s521 = scalar_lea.sflag [#allocation6], 1
    %522 = vsyncpa %s521, 1

</llo_original>
